<compile_context>
chip_gen: v7x
topology: tpu7x:2x2x1
jax: 0.10.0
libtpu: 0.0.40
codegen_flags: <defaults>
</compile_context>

<pallas_src>
import functools
import math

import jax
import jax.numpy as jnp
from jax import lax
from jax.experimental import pallas as pl
from jax.experimental.pallas import tpu as pltpu


def make_positional_encoding(d_model: int, max_len: int = 5000,
                             dtype=jnp.float32) -> jnp.ndarray:
    """Deterministic construction of the `pe` buffer: shape [max_len, 1, d_model]."""
    position = jnp.arange(max_len, dtype=jnp.float32)[:, None]          # (L, 1)
    div_term = jnp.exp(
        jnp.arange(0, d_model, 2, dtype=jnp.float32) * (-math.log(10000.0) / d_model)
    )                                                                    # (D/2,)
    pe = jnp.zeros((max_len, 1, d_model), dtype=jnp.float32)
    pe = pe.at[:, 0, 0::2].set(jnp.sin(position * div_term))
    pe = pe.at[:, 0, 1::2].set(jnp.cos(position * div_term))
    return pe.astype(dtype)


def _pos_enc_kernel(seed_ref, x_ref, pe_ref, o_ref, *,
                    p: float, train: bool, tile_rows: int):
    # x_ref: (TS, B, D) VMEM ; pe_ref: (TS, D) VMEM (already x.dtype) ;
    # seed_ref: (1,) SMEM scalar.
    x = x_ref[...]                                   # (TS, B, D)
    pe = pe_ref[...]                                 # (TS, D)
    y = x + pe[:, None, :]                           # broadcast over batch

    if train and p > 0.0:
        ts, b, d = x.shape
        # Global element index (wraps modulo 2**32 for huge tensors, which is
        # fine for RNG purposes). Folding in program_id keeps masks distinct
        # across grid tiles; folding the seed keeps them reproducible.
        base = pl.program_id(0) * (tile_rows * b * d)
        r_i = lax.broadcasted_iota(jnp.int32, (ts, b, d), 0)
        b_i = lax.broadcasted_iota(jnp.int32, (ts, b, d), 1)
        d_i = lax.broadcasted_iota(jnp.int32, (ts, b, d), 2)
        idx = (r_i * (b * d) + b_i * d + d_i + base).astype(jnp.uint32)

        seed = seed_ref[0].astype(jnp.uint32)
        # murmur3-style integer mix (portable: plain VPU int ops, no TPU PRNG).
        h = idx * jnp.uint32(0x9E3779B9) + seed
        h = h ^ (h >> jnp.uint32(16))
        h = h * jnp.uint32(0x85EBCA6B)
        h = h ^ (h >> jnp.uint32(13))
        h = h * jnp.uint32(0xC2B2AE35)
        h = h ^ (h >> jnp.uint32(16))

        # Integer threshold: drop with probability ~= p (no float convert).
        thresh = jnp.uint32(min(int(round(p * (1 << 32))), (1 << 32) - 1))
        keep = h >= thresh

        scale = jnp.asarray(1.0 / (1.0 - p), dtype=y.dtype)
        zero = jnp.asarray(0.0, dtype=y.dtype)
        y = y * jnp.where(keep, scale, zero)

    o_ref[...] = y.astype(o_ref.dtype)


def _choose_tile_rows(S: int, B: int, D: int, itemsize: int,
                      target_bytes: int = 4 << 20) -> int:
    """Largest seq tile keeping one x tile around ~4 MiB (fits every TPU gen
    with double buffering of x + out well under the v7x 64 MiB VMEM)."""
    if S <= 8:
        return S
    rows = max(8, target_bytes // max(1, B * D * itemsize))
    rows = min(S, rows)
    rows -= rows % 8          # keep pe's sublane dim (8)-aligned
    return max(rows, 8)


def positional_encoding_forward(x: jnp.ndarray, pe: jnp.ndarray,
                                *, p: float = 0.1, train: bool = False,
                                seed: int = 0) -> jnp.ndarray:
    """x: [seq_len, batch, d_model]; pe: [max_len, 1, d_model]."""
    S, B, D = x.shape
    pe_slice = pe[:S, 0, :].astype(x.dtype)          # (S, D), dtype-matched here
    seed_arr = jnp.array([seed], dtype=jnp.int32)

    itemsize = jnp.dtype(x.dtype).itemsize
    tile_rows = _choose_tile_rows(S, B, D, itemsize)
    num_tiles = pl.cdiv(S, tile_rows)

    kernel = functools.partial(_pos_enc_kernel, p=float(p), train=bool(train),
                               tile_rows=tile_rows)

    cost = pl.CostEstimate(
        flops=S * B * D,                              # one add per element
        transcendentals=0,
        bytes_accessed=(2 * S * B * D + S * D) * itemsize + 4,
    )

    return pl.pallas_call(
        kernel,
        out_shape=jax.ShapeDtypeStruct((S, B, D), x.dtype),
        grid=(num_tiles,),
        in_specs=[
            pl.BlockSpec(memory_space=pltpu.MemorySpace.SMEM),       # seed scalar
            pl.BlockSpec((tile_rows, B, D), lambda i: (i, 0, 0)),    # x seq tile
            pl.BlockSpec((tile_rows, D), lambda i: (i, 0)),          # pe seq tile
        ],
        out_specs=pl.BlockSpec((tile_rows, B, D), lambda i: (i, 0, 0)),
        compiler_params=pltpu.CompilerParams(
            dimension_semantics=("parallel",),        # use both v7x TensorCores
            vmem_limit_bytes=48 * 1024 * 1024,        # < 64 MiB physical on v7x
        ),
        cost_estimate=cost,
    )(seed_arr, x, pe_slice)


if __name__ == "__main__":
    # Small shapes consistent with the module: [seq_len, batch, d_model]
    seq_len, batch, d_model = 8, 2, 32
    max_len = 64
    p = 0.1

    key = jax.random.PRNGKey(0)
    x = jax.random.normal(key, (seq_len, batch, d_model), dtype=jnp.float32)

    pe = make_positional_encoding(d_model, max_len=max_len)

    # Eval-mode forward (dropout is identity) — deterministic, check vs reference.
    out = positional_encoding_forward(x, pe, p=p, train=False)
    out = jax.block_until_ready(out)

    ref = x + pe[:seq_len]                            # broadcasts (S,1,D) over batch
    assert out.shape == (seq_len, batch, d_model)
    assert jnp.allclose(out, ref, atol=1e-6), "mismatch vs reference add"

    # Train-mode forward (dropout active, deterministic given the seed).
    out_train = positional_encoding_forward(x, pe, p=p, train=True, seed=1234)
    out_train = jax.block_until_ready(out_train)

    ref_scaled = ref / (1.0 - p)
    is_zero = jnp.isclose(out_train, 0.0, atol=1e-6)
    is_kept = jnp.isclose(out_train, ref_scaled, atol=1e-5, rtol=1e-5)
    assert bool(jnp.all(is_zero | is_kept)), "dropout output neither 0 nor scaled"
    drop_frac = float(jnp.mean(is_zero.astype(jnp.float32)))
    assert 0.0 < drop_frac < 0.5, f"implausible drop fraction {drop_frac}"

    print("KERNEL_OK")
</pallas_src>

<mosaic_0001>
module attributes {stable_mosaic.version = 11 : i64} {
  func.func @_pos_enc_kernel(%arg0: i32, %arg1: memref<1xi32, #tpu.memory_space<smem>>, %arg2: memref<8x2x32xf32, #tpu.memory_space<vmem>>, %arg3: memref<8x32xf32, #tpu.memory_space<vmem>>, %arg4: memref<8x2x32xf32, #tpu.memory_space<vmem>>) attributes {dimension_semantics = [#tpu.dimension_semantics<parallel>], iteration_bounds = array<i64: 1>, scalar_prefetch = 0 : i64, scratch_operands = 0 : i64, tpu.core_type = #tpu.core_type<tc>, window_params = [{transform_indices = @transform_0, window_bounds = array<i64: 1>}, {transform_indices = @transform_1, window_bounds = array<i64: 8, 2, 32>}, {transform_indices = @transform_2, window_bounds = array<i64: 8, 32>}, {transform_indices = @transform_3, window_bounds = array<i64: 8, 2, 32>}]} {
    %c0 = arith.constant 0 : index
    %c0_0 = arith.constant 0 : index
    %c0_1 = arith.constant 0 : index
    %0 = vector.load %arg2[%c0, %c0_0, %c0_1] : memref<8x2x32xf32, #tpu.memory_space<vmem>>, vector<8x2x32xf32>
    %c0_2 = arith.constant 0 : index
    %c0_3 = arith.constant 0 : index
    %1 = vector.load %arg3[%c0_2, %c0_3] : memref<8x32xf32, #tpu.memory_space<vmem>>, vector<8x32xf32>
    %2 = vector.shape_cast %1 : vector<8x32xf32> to vector<8x1x32xf32>
    %3 = vector.broadcast %2 : vector<8x1x32xf32> to vector<8x2x32xf32>
    %4 = arith.addf %0, %3 : vector<8x2x32xf32>
    %c0_4 = arith.constant 0 : index
    %c0_5 = arith.constant 0 : index
    %c0_6 = arith.constant 0 : index
    %5 = vector.load %arg4[%c0_4, %c0_5, %c0_6] : memref<8x2x32xf32, #tpu.memory_space<vmem>>, vector<8x2x32xf32>
    tpu.vector_store %arg4[%c0_4, %c0_5, %c0_6], %4 {strides = array<i32>} : memref<8x2x32xf32, #tpu.memory_space<vmem>>, vector<8x2x32xf32>,
    return
  }
  func.func @transform_0(%arg0: i32) -> i32 {
    %c0_i32 = arith.constant 0 : i32
    %c0_i32_0 = arith.constant 0 : i32
    return %c0_i32 : i32
  }
  func.func @transform_1(%arg0: i32) -> (i32, i32, i32) {
    %c0_i32 = arith.constant 0 : i32
    %c0_i32_0 = arith.constant 0 : i32
    %c0_i32_1 = arith.constant 0 : i32
    return %arg0, %c0_i32, %c0_i32_0 : i32, i32, i32
  }
  func.func @transform_2(%arg0: i32) -> (i32, i32) {
    %c0_i32 = arith.constant 0 : i32
    %c0_i32_0 = arith.constant 0 : i32
    return %arg0, %c0_i32 : i32, i32
  }
  func.func @transform_3(%arg0: i32) -> (i32, i32, i32) {
    %c0_i32 = arith.constant 0 : i32
    %c0_i32_0 = arith.constant 0 : i32
    %c0_i32_1 = arith.constant 0 : i32
    return %arg0, %c0_i32, %c0_i32_0 : i32, i32, i32
  }
}

</mosaic_0001>

<llo_original>
// kernel: tpu_custom_call.1
$region0: #{tpu_custom_call.1}
  #allocation0 [shape = 'u32[]', space=smem, size = 0x4, offset = 0x4, fixed_abs, tag = 'smem constant byte address 0x4 - core index']
  #allocation1 [shape = 'u32[144,128]{1,0:T(1,128)}', space=vmem, size = 0x12000, scoped, tag = 'internal scratch']
  #allocation2 [shape = 's32[1]{0:T(128)S(6)}', space=smem, size = 0x200, scoped, tag = 'scoped memory for tpu_custom_call.1']
  %s0 = inlined_call_operand.<no memory space> [shape: s32[1], index: 0, kind: input, shape index: {}]
  %s1 = inlined_call_operand.hbm [shape: f32[8,2,32], index: 1, kind: input, shape index: {}]
  %s2 = inlined_call_operand.hbm [shape: f32[8,32], index: 2, kind: input, shape index: {}]
  %s3 = inlined_call_operand.hbm [shape: f32[8,2,32], index: 3, kind: output, shape index: {}]
  %s4 = sld [smem:[#allocation0]]
  $region30: #{tpu_custom_call.1} parent=0
    _
  %s6 = ssub.s32 1, %s4
  %s7 = scalar_select 0, %s6, %s4
  %8 = sst [smem:[#allocation2]] %s0
  $region1: #{tpu_custom_call.1} parent=0
    #allocation3 [shape = 'u8[8192]{0}', space=vmem, size = 0x2000, scoped, tag = 'input window, operand 1, single buffered']
    #allocation4 [shape = 's32[1]{0}', space=sflag, size = 0x4, scoped, tag = 'scoped memory for tpu_custom_call.1']
    #allocation5 [shape = 's32[1]{0}', space=sflag, size = 0x4, scoped, tag = 'scoped memory for tpu_custom_call.1']
    #allocation6 [shape = 'u8[4096]{0}', space=vmem, size = 0x1000, scoped, tag = 'input window, operand 2, single buffered']
    #allocation7 [shape = 's32[1]{0}', space=sflag, size = 0x4, scoped, tag = 'scoped memory for tpu_custom_call.1']
    #allocation8 [shape = 'u8[8192]{0}', space=vmem, size = 0x2000, scoped, tag = 'output window, operand 0, single buffered']
    %9 = vsyncpa [#allocation4], 0
    %10 = vsyncpa [#allocation7], 0
    %11 = vsyncpa [#allocation5], 0
    // Predicated region
    $region2: #{tpu_custom_call.1} parent=1 // pred_check
      _
    $region3: #{tpu_custom_call.1} parent=1 // pred_check_branch
      %13 = sbr.rel (0) target = $region5
    $region4: #{tpu_custom_call.1} parent=1 // pred_region
      _
    $region5: #{tpu_custom_call.1} parent=1 // pred_fallthru
      _
    // Predicated region
    $region6: #{tpu_custom_call.1} parent=1 // pred_check
      _
    $region7: #{tpu_custom_call.1} parent=1 // pred_check_branch
      %15 = sbr.rel (0) target = $region9
    $region8: #{tpu_custom_call.1} parent=1 // pred_region
      %s17 = ssub.s32 256, 256
      %18 = vsyncadd [#allocation4], %s17
      %s19 = sshll.u32 [#allocation3], 4
      %s20 = int_to_ptr.vmem [resolvable:$true] %s19
      %25 = dma.hbm_to_vmem [thread:$0]  %s1, 256, %s20, [#allocation4], 32, 32, 2
    $region9: #{tpu_custom_call.1} parent=1 // pred_fallthru
      _
    // Predicated region
    $region10: #{tpu_custom_call.1} parent=1 // pred_check
      _
    $region11: #{tpu_custom_call.1} parent=1 // pred_check_branch
      %27 = sbr.rel (0) target = $region13
    $region12: #{tpu_custom_call.1} parent=1 // pred_region
      %s29 = ssub.s32 128, 128
      %30 = vsyncadd [#allocation7], %s29
      %s32 = sshll.u32 [#allocation6], 4
      %s33 = int_to_ptr.vmem [resolvable:$true] %s32
      %35 = dma.hbm_to_vmem [thread:$0]  %s2, 128, %s33, [#allocation7]
    $region13: #{tpu_custom_call.1} parent=1 // pred_fallthru
      _
    // Predicated region
    $region14: #{tpu_custom_call.1} parent=1 // pred_check
      _
    $region15: #{tpu_custom_call.1} parent=1 // pred_check_branch
      %37 = sbr.rel (0) target = $region17
    $region16: #{tpu_custom_call.1} parent=1 // pred_region
      %38 = dma.done [#allocation4], 256
    $region17: #{tpu_custom_call.1} parent=1 // pred_fallthru
      _
    // Predicated region
    $region18: #{tpu_custom_call.1} parent=1 // pred_check
      _
    $region19: #{tpu_custom_call.1} parent=1 // pred_check_branch
      %40 = sbr.rel (0) target = $region21
    $region20: #{tpu_custom_call.1} parent=1 // pred_region
      %41 = dma.done [#allocation7], 128
    $region21: #{tpu_custom_call.1} parent=1 // pred_fallthru
      _
    %v42 = vld [vmem:[#allocation3] sm:$0x3]
    %v43 = vld [vmem:[#allocation3 + $0x2] sm:$0x3]
    %v44 = vld [vmem:[#allocation3 + $0x4] sm:$0x3]
    %v45 = vld [vmem:[#allocation3 + $0x6] sm:$0x3]
    %v46 = vld [vmem:[#allocation3 + $0x8] sm:$0x3]
    %v47 = vld [vmem:[#allocation3 + $0xa] sm:$0x3]
    %v48 = vld [vmem:[#allocation3 + $0xc] sm:$0x3]
    %v49 = vld [vmem:[#allocation3 + $0xe] sm:$0x3]
    %v50 = vld [vmem:[#allocation6] sm:$0xff]
    %v52 = vcombine.high %v50, %v50
    %v54 = vunpack.c.l.s4 1966171168
    %v55 = vunpack.c.0.s8 %v54
    %v56 = vlaneseq
    %v57 = vshrl.u32 %v56, 7
    %v58 = vsub.s32 %v55, %v57
    %v59 = vrot.slane %v50, %v58
    %v61 = vunpack.c.l.s4 1966171168
    %v62 = vunpack.c.0.s8 %v61
    %v63 = vlaneseq
    %v64 = vshrl.u32 %v63, 7
    %v65 = vsub.s32 %v62, %v64
    %v66 = vrot.slane %v52, %v65
    %v67 = vcombine.high %v59, %v59
    %v68 = vcombine.high %v66, %v66
    %v70 = vunpack.c.l.s4 1966171168
    %v71 = vunpack.c.0.s8 %v70
    %v72 = vlaneseq
    %v73 = vshrl.u32 %v72, 7
    %v74 = vsub.s32 %v71, %v73
    %v75 = vrot.slane %v59, %v74
    %v77 = vunpack.c.l.s4 1966171168
    %v78 = vunpack.c.0.s8 %v77
    %v79 = vlaneseq
    %v80 = vshrl.u32 %v79, 7
    %v81 = vsub.s32 %v78, %v80
    %v82 = vrot.slane %v66, %v81
    %v84 = vunpack.c.l.s4 1966171168
    %v85 = vunpack.c.0.s8 %v84
    %v86 = vlaneseq
    %v87 = vshrl.u32 %v86, 7
    %v88 = vsub.s32 %v85, %v87
    %v89 = vrot.slane %v67, %v88
    %v91 = vunpack.c.l.s4 1966171168
    %v92 = vunpack.c.0.s8 %v91
    %v93 = vlaneseq
    %v94 = vshrl.u32 %v93, 7
    %v95 = vsub.s32 %v92, %v94
    %v96 = vrot.slane %v68, %v95
    %v97 = vcombine.high %v75, %v75
    %v98 = vcombine.high %v82, %v82
    %v99 = vcombine.high %v89, %v89
    %v100 = vcombine.high %v96, %v96
    %v101 = vlaneseq
    %v102 = vshrl.u32 %v101, 7
    %v103 = vsub.s32 0, %v102
    %v104 = vrot.slane %v75, %v103
    %v105 = vlaneseq
    %v106 = vshrl.u32 %v105, 7
    %v107 = vsub.s32 0, %v106
    %v108 = vrot.slane %v89, %v107
    %v109 = vlaneseq
    %v110 = vshrl.u32 %v109, 7
    %v111 = vsub.s32 0, %v110
    %v112 = vrot.slane %v97, %v111
    %v113 = vlaneseq
    %v114 = vshrl.u32 %v113, 7
    %v115 = vsub.s32 0, %v114
    %v116 = vrot.slane %v99, %v115
    %v117 = vlaneseq
    %v118 = vshrl.u32 %v117, 7
    %v119 = vsub.s32 0, %v118
    %v120 = vrot.slane %v82, %v119
    %v121 = vlaneseq
    %v122 = vshrl.u32 %v121, 7
    %v123 = vsub.s32 0, %v122
    %v124 = vrot.slane %v96, %v123
    %v125 = vlaneseq
    %v126 = vshrl.u32 %v125, 7
    %v127 = vsub.s32 0, %v126
    %v128 = vrot.slane %v98, %v127
    %v129 = vlaneseq
    %v130 = vshrl.u32 %v129, 7
    %v131 = vsub.s32 0, %v130
    %v132 = vrot.slane %v100, %v131
    %v141 = vadd.f32 %v42, %v104
    %v142 = vadd.f32 %v43, %v108
    %v143 = vadd.f32 %v44, %v112
    %v144 = vadd.f32 %v45, %v116
    %v145 = vadd.f32 %v46, %v120
    %v146 = vadd.f32 %v47, %v124
    %v147 = vadd.f32 %v48, %v128
    %v148 = vadd.f32 %v49, %v132
    %vm149 = vcmask 254976
    %150 = vst.msk [vmem:[#allocation8] sm:$0x3] %vm149, %v141
    %151 = vst.msk [vmem:[#allocation8 + $0x2] sm:$0x3] %vm149, %v142
    %152 = vst.msk [vmem:[#allocation8 + $0x4] sm:$0x3] %vm149, %v143
    %153 = vst.msk [vmem:[#allocation8 + $0x6] sm:$0x3] %vm149, %v144
    %154 = vst.msk [vmem:[#allocation8 + $0x8] sm:$0x3] %vm149, %v145
    %155 = vst.msk [vmem:[#allocation8 + $0xa] sm:$0x3] %vm149, %v146
    %156 = vst.msk [vmem:[#allocation8 + $0xc] sm:$0x3] %vm149, %v147
    %157 = vst.msk [vmem:[#allocation8 + $0xe] sm:$0x3] %vm149, %v148
    // Predicated region
    $region22: #{tpu_custom_call.1} parent=1 // pred_check
      _
    $region23: #{tpu_custom_call.1} parent=1 // pred_check_branch
      %159 = sbr.rel (0) target = $region25
    $region24: #{tpu_custom_call.1} parent=1 // pred_region
      %s161 = ssub.s32 256, 256
      %162 = vsyncadd [#allocation5], %s161
      %s163 = sshll.u32 [#allocation8], 4
      %s164 = int_to_ptr.vmem [resolvable:$true] %s163
      %169 = dma.vmem_to_hbm [thread:$0]  %s164, 256, %s3, [#allocation5], 32, 32, 2
    $region25: #{tpu_custom_call.1} parent=1 // pred_fallthru
      _
    // Predicated region
    $region26: #{tpu_custom_call.1} parent=1 // pred_check
      _
    $region27: #{tpu_custom_call.1} parent=1 // pred_check_branch
      %171 = sbr.rel (0) target = $region29
    $region28: #{tpu_custom_call.1} parent=1 // pred_region
      %172 = dma.done [#allocation5], 256
    $region29: #{tpu_custom_call.1} parent=1 // pred_fallthru
      _
    %173 = vsyncpa [#allocation4], 1
    %174 = vsyncpa [#allocation7], 1
    %175 = vsyncpa [#allocation5], 1

</llo_original>
